<compile_context>
chip_gen: v7x
topology: tpu7x:2x2x1
jax: 0.10.0
libtpu: 0.0.40
codegen_flags: <defaults>
</compile_context>

<pallas_src>
import numpy as np
import jax
import jax.numpy as jnp
from jax import lax
from jax.experimental import pallas as pl
from jax.experimental.pallas import tpu as pltpu


def _condnet_kernel(z_ref, w_ref, o_ref):
    # z_ref: (TB, z_dim)       -- batch-row tile
    # w_ref: (out_dim, z_dim)  -- PyTorch nn.Linear layout, consumed as-is
    # o_ref: (TB, out_dim)
    # Contract the z_dim axes of both operands (== z @ W.T) on the MXU, f32 accumulate.
    o_ref[...] = lax.dot_general(
        z_ref[...],
        w_ref[...],
        dimension_numbers=(((1,), (1,)), ((), ())),
        preferred_element_type=jnp.float32,
    ).astype(o_ref.dtype)


def _pick_batch_tile(B: int) -> int:
    """Mem-bound op => biggest batch block that comfortably fits VMEM.

    TB=1024: double-buffered z (1024x6 f32) + out (1024x59 f32) blocks plus the
    resident (59x6) weight is ~0.5 MiB, well under the scoped-VMEM default on every
    generation (incl. v7x's 64 MiB VMEM).  For B <= 1024 we use a single full-array
    block (block == array dims waives the (8,128) divisibility rule).
    """
    if B <= 1024:
        return B
    return 1024  # multiple of 8 -> satisfies the sublane constraint when tiling


def condnet_forward(z: jax.Array, weight: jax.Array, output_shape=(1, 59)) -> jax.Array:
    """CondNet.forward: (z @ weight.T).reshape(-1, 1, output_shape[-1]).

    z      : (B, z_dim) float32
    weight : (out_dim, z_dim) float32  (PyTorch nn.Linear convention, used untransposed)
    returns: (B, 1, output_shape[-1]) float32
    """
    B, z_dim = z.shape
    out_dim = weight.shape[0]
    assert weight.shape[1] == z_dim
    assert out_dim == int(np.prod(output_shape))

    tb = _pick_batch_tile(B)
    grid = (pl.cdiv(B, tb),)

    cost = pl.CostEstimate(
        flops=2 * B * z_dim * out_dim,
        transcendentals=0,
        bytes_accessed=4 * (B * z_dim + out_dim * z_dim + B * out_dim),
    )

    out2d = pl.pallas_call(
        _condnet_kernel,
        out_shape=jax.ShapeDtypeStruct((B, out_dim), jnp.float32),
        grid_spec=pltpu.PrefetchScalarGridSpec(
            num_scalar_prefetch=0,
            grid=grid,
            in_specs=[
                # z: tiled along batch; lane dim (z_dim) equals the full array dim.
                pl.BlockSpec((tb, z_dim), lambda i: (i, 0)),
                # weight: full-array block, constant index_map -> VMEM-resident
                # across all batch tiles (single DMA).
                pl.BlockSpec((out_dim, z_dim), lambda i: (0, 0)),
            ],
            out_specs=pl.BlockSpec((tb, out_dim), lambda i: (i, 0)),
        ),
        compiler_params=pltpu.CompilerParams(
            # Batch tiles independent -> megacore-shardable on v7x; harmless elsewhere.
            dimension_semantics=("parallel",),
        ),
        cost_estimate=cost,
    )(z, weight)

    return out2d.reshape(-1, 1, output_shape[-1])


def init_condnet_weight(key, z_dim: int, out_dim: int) -> jax.Array:
    """Deterministic xavier_uniform init matching nn.init.xavier_uniform_."""
    fan_in, fan_out = z_dim, out_dim
    bound = float(np.sqrt(6.0 / (fan_in + fan_out)))
    # PyTorch Linear weight shape: (out_features, in_features)
    return jax.random.uniform(
        key, (out_dim, z_dim), dtype=jnp.float32, minval=-bound, maxval=bound
    )


if __name__ == "__main__":
    z_dim = 6
    output_shape = (1, 59)
    out_dim = int(np.prod(output_shape))
    batch = 4

    key = jax.random.PRNGKey(0)
    k_w, k_z = jax.random.split(key)

    weight = init_condnet_weight(k_w, z_dim, out_dim)              # (59, 6)
    z = jax.random.normal(k_z, (batch, z_dim), dtype=jnp.float32)  # (4, 6)

    out = condnet_forward(z, weight, output_shape)
    out = jax.block_until_ready(out)

    # Reference check against plain JAX (same math as torch Linear, bias=False).
    ref = (z @ weight.T).reshape(-1, 1, output_shape[-1])
    np.testing.assert_allclose(np.asarray(out), np.asarray(ref), rtol=1e-5, atol=1e-5)
    assert out.shape == (batch, 1, output_shape[-1])

    print("KERNEL_OK")
</pallas_src>

<mosaic_0001>
module attributes {stable_mosaic.version = 11 : i64} {
  func.func @_condnet_kernel(%arg0: i32, %arg1: memref<4x6xf32, #tpu.memory_space<vmem>>, %arg2: memref<59x6xf32, #tpu.memory_space<vmem>>, %arg3: memref<4x59xf32, #tpu.memory_space<vmem>>) attributes {dimension_semantics = [#tpu.dimension_semantics<parallel>], iteration_bounds = array<i64: 1>, scalar_prefetch = 0 : i64, scratch_operands = 0 : i64, tpu.core_type = #tpu.core_type<tc>, window_params = [{transform_indices = @transform_0, window_bounds = array<i64: 4, 6>}, {pipeline_mode = #tpu.pipeline_mode<synchronous>, transform_indices = @transform_1, window_bounds = array<i64: 59, 6>}, {transform_indices = @transform_2, window_bounds = array<i64: 4, 59>}]} {
    %c0 = arith.constant 0 : index
    %c0_0 = arith.constant 0 : index
    %0 = vector.load %arg1[%c0, %c0_0] : memref<4x6xf32, #tpu.memory_space<vmem>>, vector<4x6xf32>
    %c0_1 = arith.constant 0 : index
    %c0_2 = arith.constant 0 : index
    %1 = vector.load %arg2[%c0_1, %c0_2] : memref<59x6xf32, #tpu.memory_space<vmem>>, vector<59x6xf32>
    %cst = arith.constant dense<0.000000e+00> : vector<4x59xf32>
    %2 = tpu.matmul %0, %1, %cst {dimension_numbers = #tpu.dot_dimension_numbers<[1], [1], [0], [0], [0, 0, 1, 0], [], []>} : vector<4x6xf32>, vector<59x6xf32>, vector<4x59xf32> -> vector<4x59xf32>
    %c0_3 = arith.constant 0 : index
    %c0_4 = arith.constant 0 : index
    %3 = vector.load %arg3[%c0_3, %c0_4] : memref<4x59xf32, #tpu.memory_space<vmem>>, vector<4x59xf32>
    tpu.vector_store %arg3[%c0_3, %c0_4], %2 {strides = array<i32>} : memref<4x59xf32, #tpu.memory_space<vmem>>, vector<4x59xf32>,
    return
  }
  func.func @transform_0(%arg0: i32) -> (i32, i32) {
    %c0_i32 = arith.constant 0 : i32
    %c0_i32_0 = arith.constant 0 : i32
    return %arg0, %c0_i32 : i32, i32
  }
  func.func @transform_1(%arg0: i32) -> (i32, i32) {
    %c0_i32 = arith.constant 0 : i32
    %c0_i32_0 = arith.constant 0 : i32
    %c0_i32_1 = arith.constant 0 : i32
    return %c0_i32, %c0_i32_0 : i32, i32
  }
  func.func @transform_2(%arg0: i32) -> (i32, i32) {
    %c0_i32 = arith.constant 0 : i32
    %c0_i32_0 = arith.constant 0 : i32
    return %arg0, %c0_i32 : i32, i32
  }
}

</mosaic_0001>

<llo_original>
// kernel: tpu_custom_call.1
$region0: #{tpu_custom_call.1}
  #allocation0 [shape = 'u32[]', space=smem, size = 0x4, offset = 0x4, fixed_abs, tag = 'smem constant byte address 0x4 - core index']
  #allocation1 [shape = 'u32[144,128]{1,0:T(1,128)}', space=vmem, size = 0x12000, scoped, tag = 'internal scratch']
  %s0 = inlined_call_operand.vmem [shape: f32[4,6], index: 0, kind: input, shape index: {}]
  %s1 = inlined_call_operand.vmem [shape: f32[59,6], index: 1, kind: input, shape index: {}]
  %s2 = inlined_call_operand.hbm [shape: f32[4,59], index: 2, kind: output, shape index: {}]
  %s3 = sld [smem:[#allocation0]]
  $region18: #{tpu_custom_call.1} parent=0
    _
  %s5 = ssub.s32 1, %s3
  %s6 = scalar_select 0, %s5, %s3
  $region1: #{tpu_custom_call.1} parent=0
    #allocation2 [shape = 'u8[2048]{0}', space=vmem, size = 0x800, scoped, tag = 'output window, operand 0, single buffered']
    #allocation3 [shape = 's32[1]{0}', space=sflag, size = 0x4, scoped, tag = 'scoped memory for tpu_custom_call.1']
    %7 = vsyncpa [#allocation3], 0
    // Predicated region
    $region2: #{tpu_custom_call.1} parent=1 // pred_check
      _
    $region3: #{tpu_custom_call.1} parent=1 // pred_check_branch
      %9 = sbr.rel (0) target = $region5
    $region4: #{tpu_custom_call.1} parent=1 // pred_region
      _
    $region5: #{tpu_custom_call.1} parent=1 // pred_fallthru
      _
    // Predicated region
    $region6: #{tpu_custom_call.1} parent=1 // pred_check
      _
    $region7: #{tpu_custom_call.1} parent=1 // pred_check_branch
      %11 = sbr.rel (0) target = $region9
    $region8: #{tpu_custom_call.1} parent=1 // pred_region
      _
    $region9: #{tpu_custom_call.1} parent=1 // pred_fallthru
      _
    %v12 = vld [vmem:[%s0] sm:$0xf]
    %v13 = vld [vmem:[%s1] sm:$0xff]
    %v14 = vld [vmem:[%s1 + $0x8] sm:$0xff]
    %v15 = vld [vmem:[%s1 + $0x10] sm:$0xff]
    %v16 = vld [vmem:[%s1 + $0x18] sm:$0xff]
    %v17 = vld [vmem:[%s1 + $0x20] sm:$0xff]
    %v18 = vld [vmem:[%s1 + $0x28] sm:$0xff]
    %v19 = vld [vmem:[%s1 + $0x30] sm:$0xff]
    %v20 = vld [vmem:[%s1 + $0x38] sm:$0x7]
    %vm21 = vcmask 48128
    %v23 = vsel %vm21, %v12, 0
    %v26 = vsel %vm21, %v13, 0
    %v29 = vsel %vm21, %v14, 0
    %v32 = vsel %vm21, %v15, 0
    %v35 = vsel %vm21, %v16, 0
    %v38 = vsel %vm21, %v17, 0
    %v41 = vsel %vm21, %v18, 0
    %v44 = vsel %vm21, %v19, 0
    %v47 = vsel %vm21, %v20, 0
    %49 = vmatprep.subr.mxu0 0.0
    %50 = vmatpush1.xpose.msra.mxu0 %v26
    %51 = vmatprep.subr.mxu0 0.0
    %52 = vmatpush1.xpose.msra.mxu0 %v29
    %53 = vmatprep.subr.mxu0 0.0
    %54 = vmatpush1.xpose.msra.mxu0 %v32
    %55 = vmatprep.subr.mxu0 0.0
    %56 = vmatpush1.xpose.msra.mxu0 %v35
    %57 = vmatprep.subr.mxu0 0.0
    %58 = vmatpush1.xpose.msra.mxu0 %v38
    %59 = vmatprep.subr.mxu0 0.0
    %60 = vmatpush1.xpose.msra.mxu0 %v41
    %61 = vmatprep.subr.mxu0 0.0
    %62 = vmatpush1.xpose.msra.mxu0 %v44
    %63 = vmatprep.subr.mxu0 0.0
    %64 = vmatpush1.xpose.msra.mxu0 %v47
    %65 = vmatprep.subr.mxu0 0.0
    %66 = vmatpush1.xpose.msra.mxu0 0.0
    %67 = vmatprep.subr.mxu0 0.0
    %68 = vmatpush1.xpose.msra.mxu0 0.0
    %69 = vmatprep.subr.mxu0 0.0
    %70 = vmatpush1.xpose.msra.mxu0 0.0
    %71 = vmatprep.subr.mxu0 0.0
    %72 = vmatpush1.xpose.msra.mxu0 0.0
    %73 = vmatprep.subr.mxu0 0.0
    %74 = vmatpush1.xpose.msra.mxu0 0.0
    %75 = vmatprep.subr.mxu0 0.0
    %76 = vmatpush1.xpose.msra.mxu0 0.0
    %77 = vmatprep.subr.mxu0 0.0
    %78 = vmatpush1.xpose.msra.mxu0 0.0
    %79 = vmatprep.subr.mxu0 0.0
    %80 = vmatpush1.xpose.msra.mxu0 0.0
    %81 = vmatprep.subr.mxu0 0.0
    %82 = vmatpush1.xpose.msra.mxu0 0.0
    %83 = vmatprep.subr.mxu0 0.0
    %84 = vmatpush1.xpose.msra.mxu0 0.0
    %85 = vmatprep.subr.mxu0 0.0
    %86 = vmatpush1.xpose.msra.mxu0 0.0
    %87 = vmatprep.subr.mxu0 0.0
    %88 = vmatpush1.xpose.msra.mxu0 0.0
    %89 = vmatprep.subr.mxu0 0.0
    %90 = vmatpush1.xpose.msra.mxu0 0.0
    %91 = vmatprep.subr.mxu0 0.0
    %92 = vmatpush1.xpose.msra.mxu0 0.0
    %93 = vmatprep.subr.mxu0 0.0
    %94 = vmatpush1.xpose.msra.mxu0 0.0
    %95 = vmatprep.subr.mxu0 0.0
    %96 = vmatpush1.xpose.msra.mxu0 0.0
    %97 = vmatprep.subr.mxu0 0.0
    %98 = vmatpush1.xpose.msra.mxu0 0.0
    %99 = vmatprep.subr.mxu0 0.0
    %100 = vmatpush1.xpose.msra.mxu0 0.0
    %101 = vmatprep.subr.mxu0 0.0
    %102 = vmatpush1.xpose.msra.mxu0 0.0
    %103 = vmatprep.subr.mxu0 0.0
    %104 = vmatpush1.xpose.msra.mxu0 0.0
    %105 = vmatprep.subr.mxu0 0.0
    %106 = vmatpush1.xpose.msra.mxu0 0.0
    %107 = vmatprep.subr.mxu0 0.0
    %108 = vmatpush1.xpose.msra.mxu0 0.0
    %109 = vmatprep.subr.mxu0 0.0
    %110 = vmatpush1.xpose.msra.mxu0 0.0
    %111 = vmatprep.subr.mxu0 0.0
    %112 = vmatpush1.xpose.msra.mxu0 0.0
    %113 = vmatprep.mubr.f32.mxu0 0.0
    %114 = vmatmul.mubr.f32.gmra.mrb[0].mxu0 %v23
    %v115 = vpop.f32.mrb[0].mxu0
    %v116 = vadd.f32 0.0, %v115
    %v117 = vpop.f32.mrb[0].mxu0
    %118 = vdwg.mxu0
    %vm119 = vcmask 478208
    %120 = vst.msk [vmem:[#allocation2] sm:$0xf] %vm119, %v116
    // Predicated region
    $region10: #{tpu_custom_call.1} parent=1 // pred_check
      _
    $region11: #{tpu_custom_call.1} parent=1 // pred_check_branch
      %122 = sbr.rel (0) target = $region13
    $region12: #{tpu_custom_call.1} parent=1 // pred_region
      %s124 = ssub.s32 64, 64
      %125 = vsyncadd [#allocation3], %s124
      %s127 = sshll.u32 [#allocation2], 4
      %s128 = int_to_ptr.vmem [resolvable:$true] %s127
      %130 = dma.vmem_to_hbm [thread:$0]  %s128, 64, %s2, [#allocation3]
    $region13: #{tpu_custom_call.1} parent=1 // pred_fallthru
      _
    // Predicated region
    $region14: #{tpu_custom_call.1} parent=1 // pred_check
      _
    $region15: #{tpu_custom_call.1} parent=1 // pred_check_branch
      %132 = sbr.rel (0) target = $region17
    $region16: #{tpu_custom_call.1} parent=1 // pred_region
      %133 = dma.done [#allocation3], 64
    $region17: #{tpu_custom_call.1} parent=1 // pred_fallthru
      _
    %134 = vsyncpa [#allocation3], 1

</llo_original>
